<compile_context>
chip_gen: v6e
topology: v6e:2x2x1
jax: 0.10.0
libtpu: 0.0.40
codegen_flags: <defaults>
</compile_context>

<pallas_src>
import jax
import jax.numpy as jnp
from jax.experimental import pallas as pl
from jax.experimental.pallas import tpu as pltpu

EPS = 1e-5
K_IN, K_PAD = 28 * 28, 896       # fc1 contraction dim, padded to 7*128
H1 = 128                         # fc1 output features
H2, H2_PAD = 10, 128             # fc2 output features, padded to lane width


def _random_u32(shape, seed_u32):
    """Counter-based hash PRNG: one uint32 word per (row, col) element."""
    rows = jax.lax.broadcasted_iota(jnp.int32, shape, 0).astype(jnp.uint32)
    cols = jax.lax.broadcasted_iota(jnp.int32, shape, 1).astype(jnp.uint32)
    h = (rows * jnp.uint32(0x9E3779B1)
         + cols * jnp.uint32(0x85EBCA77)
         + seed_u32 * jnp.uint32(0xC2B2AE3D))
    # murmur3 fmix32 finalizer
    h = h ^ (h >> 16)
    h = h * jnp.uint32(0x7FEB352D)
    h = h ^ (h >> 15)
    h = h * jnp.uint32(0x846CA68B)
    h = h ^ (h >> 16)
    return h


def _mlp_kernel(seed_ref, x_ref, w1_ref, w2_ref, p_ref, o_ref):
    x = x_ref[...]                                   # (B, 896) f32
    inv_b = jnp.float32(1.0 / x.shape[0])

    p = p_ref[...]                                   # (8, 128) packed params
    b1, g1, be1 = p[0:1], p[1:2], p[2:3]
    b2, g2, be2 = p[3:4], p[4:5], p[5:6]

    # ---- fc1 + relu  (bf16 MXU feed, f32 accumulate) ----
    h = jnp.dot(x.astype(jnp.bfloat16), w1_ref[...].astype(jnp.bfloat16),
                preferred_element_type=jnp.float32) + b1
    h = jnp.maximum(h, 0.0)                          # (B, 128)

    # ---- one (B,128) PRNG draw; two independent high bits -> two masks ----
    bits = _random_u32(h.shape, seed_ref[0].astype(jnp.uint32))
    keep1 = (bits & jnp.uint32(0x80000000)) == 0     # P(keep) = 0.5
    keep2 = (bits & jnp.uint32(0x40000000)) == 0     # independent of keep1

    # ---- dropout1 (training mode: p=0.5, scale by 1/(1-p)=2) ----
    h = jnp.where(keep1, h * 2.0, 0.0)

    # ---- bn1 (training: batch stats, biased var), fused single pass ----
    mu1 = jnp.sum(h, axis=0, keepdims=True) * inv_b
    ms1 = jnp.sum(h * h, axis=0, keepdims=True) * inv_b
    var1 = jnp.maximum(ms1 - mu1 * mu1, 0.0)
    h = (h - mu1) * jax.lax.rsqrt(var1 + EPS) * g1 + be1

    # ---- relu ----
    h = jnp.maximum(h, 0.0)

    # ---- fc2 + relu (output padded to 128 lane-dense features) ----
    z = jnp.dot(h.astype(jnp.bfloat16), w2_ref[...].astype(jnp.bfloat16),
                preferred_element_type=jnp.float32) + b2
    z = jnp.maximum(z, 0.0)                          # cols 10..127 are exactly 0

    # ---- dropout2 ----
    z = jnp.where(keep2, z * 2.0, 0.0)

    # ---- bn2 ----
    mu2 = jnp.sum(z, axis=0, keepdims=True) * inv_b
    ms2 = jnp.sum(z * z, axis=0, keepdims=True) * inv_b
    var2 = jnp.maximum(ms2 - mu2 * mu2, 0.0)
    z = (z - mu2) * jax.lax.rsqrt(var2 + EPS) * g2 + be2

    o_ref[...] = z.astype(o_ref.dtype)               # (B, 128), lane-dense store


def init_params(key):
    """Torch-equivalent parameter shapes & init (weights stored transposed)."""
    k1, k2 = jax.random.split(key)

    def xavier_uniform(k, fan_in, fan_out):
        bound = (6.0 / (fan_in + fan_out)) ** 0.5
        # torch weight is (out, in); we store it transposed as (in, out).
        return jax.random.uniform(k, (fan_in, fan_out), jnp.float32, -bound, bound)

    w1 = xavier_uniform(k1, K_IN, H1)                # fc1
    b1 = jnp.zeros((H1,), jnp.float32)
    g1 = jnp.ones((H1,), jnp.float32)                # bn1 gamma
    beta1 = jnp.zeros((H1,), jnp.float32)            # bn1 beta
    w2 = xavier_uniform(k2, H1, H2)                  # fc2
    b2 = jnp.zeros((H2,), jnp.float32)
    g2 = jnp.ones((H2,), jnp.float32)                # bn2 gamma
    beta2 = jnp.zeros((H2,), jnp.float32)            # bn2 beta
    return (w1, b1, g1, beta1, w2, b2, g2, beta2)


def pack_params(params):
    """Pad to TPU-friendly shapes; pack the six small vectors into one array."""
    w1, b1, g1, beta1, w2, b2, g2, beta2 = params
    w1p = jnp.pad(w1, ((0, K_PAD - K_IN), (0, 0)))            # (896, 128)
    w2p = jnp.pad(w2, ((0, 0), (0, H2_PAD - H2)))             # (128, 128)
    pvec = jnp.stack([
        b1, g1, beta1,
        jnp.pad(b2, (0, H2_PAD - H2)),
        jnp.pad(g2, (0, H2_PAD - H2), constant_values=1.0),   # finite pad for gamma
        jnp.pad(beta2, (0, H2_PAD - H2)),
        jnp.zeros((H2_PAD,), jnp.float32),
        jnp.zeros((H2_PAD,), jnp.float32),
    ])                                                        # (8, 128)
    return w1p, w2p, pvec


def dropout_batchnorm_nn_forward(x, packed_params, seed=0):
    """x: (B, 1, 28, 28) NCHW float32. Returns (B, 10) float32 (training fwd)."""
    w1p, w2p, pvec = packed_params
    B = x.shape[0]
    xf = x.reshape(B, K_IN)                                   # torch.flatten(x, 1)
    xf = jnp.pad(xf, ((0, 0), (0, K_PAD - K_IN)))             # pad contraction dim
    seed_arr = jnp.array([seed], dtype=jnp.int32)

    def full_spec(a):
        # whole array in VMEM (block == full array), constant index map
        return pl.BlockSpec(a.shape, lambda *_: (0,) * a.ndim)

    out = pl.pallas_call(
        _mlp_kernel,
        out_shape=jax.ShapeDtypeStruct((B, H2_PAD), jnp.float32),
        grid_spec=pltpu.PrefetchScalarGridSpec(
            num_scalar_prefetch=1,                            # seed -> SMEM
            grid=(1,),
            in_specs=[full_spec(a) for a in (xf, w1p, w2p, pvec)],
            out_specs=pl.BlockSpec((B, H2_PAD), lambda *_: (0, 0)),
        ),
        compiler_params=pltpu.CompilerParams(
            dimension_semantics=("arbitrary",),
            vmem_limit_bytes=32 * 1024 * 1024),
    )(seed_arr, xf, w1p, w2p, pvec)
    # TODO(synk): for large B, tile the batch over a real grid with a two-pass
    #             (partial-sum) BatchNorm instead of whole-batch-resident VMEM.
    return out[:, :H2]


if __name__ == "__main__":
    key = jax.random.PRNGKey(0)
    k_param, k_x = jax.random.split(key)

    params = init_params(k_param)
    packed = pack_params(params)
    x = jax.random.normal(k_x, (8, 1, 28, 28), dtype=jnp.float32)   # B=8, NCHW

    out = dropout_batchnorm_nn_forward(x, packed, seed=0)
    out = jax.block_until_ready(out)

    assert out.shape == (8, 10) and out.dtype == jnp.float32
    assert bool(jnp.all(jnp.isfinite(out)))
    print("KERNEL_OK")
</pallas_src>

<mosaic_0001>
module attributes {stable_mosaic.version = 11 : i64} {
  func.func @_mlp_kernel(%arg0: i32, %arg1: memref<1xi32, #tpu.memory_space<smem>>, %arg2: memref<8x896xf32, #tpu.memory_space<vmem>>, %arg3: memref<896x128xf32, #tpu.memory_space<vmem>>, %arg4: memref<128x128xf32, #tpu.memory_space<vmem>>, %arg5: memref<8x128xf32, #tpu.memory_space<vmem>>, %arg6: memref<8x128xf32, #tpu.memory_space<vmem>>) attributes {dimension_semantics = [#tpu.dimension_semantics<arbitrary>], iteration_bounds = array<i64: 1>, scalar_prefetch = 1 : i64, scratch_operands = 0 : i64, tpu.core_type = #tpu.core_type<tc>, window_params = [{pipeline_mode = #tpu.pipeline_mode<synchronous>, transform_indices = @transform_0, window_bounds = array<i64: 8, 896>}, {pipeline_mode = #tpu.pipeline_mode<synchronous>, transform_indices = @transform_1, window_bounds = array<i64: 896, 128>}, {pipeline_mode = #tpu.pipeline_mode<synchronous>, transform_indices = @transform_2, window_bounds = array<i64: 128, 128>}, {pipeline_mode = #tpu.pipeline_mode<synchronous>, transform_indices = @transform_3, window_bounds = array<i64: 8, 128>}, {pipeline_mode = #tpu.pipeline_mode<synchronous>, transform_indices = @transform_4, window_bounds = array<i64: 8, 128>}]} {
    %c0 = arith.constant 0 : index
    %c0_0 = arith.constant 0 : index
    %0 = vector.load %arg2[%c0, %c0_0] : memref<8x896xf32, #tpu.memory_space<vmem>>, vector<8x896xf32>
    %c0_1 = arith.constant 0 : index
    %c0_2 = arith.constant 0 : index
    %1 = vector.load %arg5[%c0_1, %c0_2] : memref<8x128xf32, #tpu.memory_space<vmem>>, vector<8x128xf32>
    %2 = vector.extract_strided_slice %1 {offsets = [0, 0], sizes = [1, 128], strides = [1, 1]} : vector<8x128xf32> to vector<1x128xf32>
    %3 = vector.extract_strided_slice %1 {offsets = [1, 0], sizes = [1, 128], strides = [1, 1]} : vector<8x128xf32> to vector<1x128xf32>
    %4 = vector.extract_strided_slice %1 {offsets = [2, 0], sizes = [1, 128], strides = [1, 1]} : vector<8x128xf32> to vector<1x128xf32>
    %5 = vector.extract_strided_slice %1 {offsets = [3, 0], sizes = [1, 128], strides = [1, 1]} : vector<8x128xf32> to vector<1x128xf32>
    %6 = vector.extract_strided_slice %1 {offsets = [4, 0], sizes = [1, 128], strides = [1, 1]} : vector<8x128xf32> to vector<1x128xf32>
    %7 = vector.extract_strided_slice %1 {offsets = [5, 0], sizes = [1, 128], strides = [1, 1]} : vector<8x128xf32> to vector<1x128xf32>
    %8 = arith.truncf %0 : vector<8x896xf32> to vector<8x896xbf16>
    %c0_3 = arith.constant 0 : index
    %c0_4 = arith.constant 0 : index
    %9 = vector.load %arg3[%c0_3, %c0_4] : memref<896x128xf32, #tpu.memory_space<vmem>>, vector<896x128xf32>
    %10 = arith.truncf %9 : vector<896x128xf32> to vector<896x128xbf16>
    %cst = arith.constant dense<0.000000e+00> : vector<8x128xf32>
    %11 = tpu.matmul %8, %10, %cst {dimension_numbers = #tpu.dot_dimension_numbers<[1], [0], [0], [1], [0, 0, 1, 1], [], []>} : vector<8x896xbf16>, vector<896x128xbf16>, vector<8x128xf32> -> vector<8x128xf32>
    %12 = vector.broadcast %2 : vector<1x128xf32> to vector<8x128xf32>
    %13 = arith.addf %11, %12 : vector<8x128xf32>
    %cst_5 = arith.constant 0.000000e+00 : f32
    %14 = vector.broadcast %cst_5 : f32 to vector<8x128xf32>
    %15 = arith.maximumf %13, %14 : vector<8x128xf32>
    %c0_6 = arith.constant 0 : index
    %16 = memref.load %arg1[%c0_6] : memref<1xi32, #tpu.memory_space<smem>>
    %17 = tpu.iota {dimensions = array<i32: 0>} : vector<8x128xi32>
    %18 = tpu.iota {dimensions = array<i32: 1>} : vector<8x128xi32>
    %c-1640531535_i32 = arith.constant -1640531535 : i32
    %19 = vector.broadcast %c-1640531535_i32 : i32 to vector<8x128xi32>
    %20 = arith.muli %17, %19 : vector<8x128xi32>
    %c-2048144777_i32 = arith.constant -2048144777 : i32
    %21 = vector.broadcast %c-2048144777_i32 : i32 to vector<8x128xi32>
    %22 = arith.muli %18, %21 : vector<8x128xi32>
    %23 = arith.addi %20, %22 : vector<8x128xi32>
    %c-1028477379_i32 = arith.constant -1028477379 : i32
    %24 = arith.muli %16, %c-1028477379_i32 : i32
    %25 = vector.broadcast %24 : i32 to vector<8x128xi32>
    %26 = arith.addi %23, %25 : vector<8x128xi32>
    %c16_i32 = arith.constant 16 : i32
    %27 = vector.broadcast %c16_i32 : i32 to vector<8x128xi32>
    %28 = arith.shrui %26, %27 : vector<8x128xi32>
    %29 = arith.xori %26, %28 : vector<8x128xi32>
    %c2146121005_i32 = arith.constant 2146121005 : i32
    %30 = vector.broadcast %c2146121005_i32 : i32 to vector<8x128xi32>
    %31 = arith.muli %29, %30 : vector<8x128xi32>
    %c15_i32 = arith.constant 15 : i32
    %32 = vector.broadcast %c15_i32 : i32 to vector<8x128xi32>
    %33 = arith.shrui %31, %32 : vector<8x128xi32>
    %34 = arith.xori %31, %33 : vector<8x128xi32>
    %c-2073254261_i32 = arith.constant -2073254261 : i32
    %35 = vector.broadcast %c-2073254261_i32 : i32 to vector<8x128xi32>
    %36 = arith.muli %34, %35 : vector<8x128xi32>
    %c16_i32_7 = arith.constant 16 : i32
    %37 = vector.broadcast %c16_i32_7 : i32 to vector<8x128xi32>
    %38 = arith.shrui %36, %37 : vector<8x128xi32>
    %39 = arith.xori %36, %38 : vector<8x128xi32>
    %c-2147483648_i32 = arith.constant -2147483648 : i32
    %40 = vector.broadcast %c-2147483648_i32 : i32 to vector<8x128xi32>
    %41 = arith.andi %39, %40 : vector<8x128xi32>
    %c0_i32 = arith.constant 0 : i32
    %42 = vector.broadcast %c0_i32 : i32 to vector<8x128xi32>
    %43 = arith.cmpi eq, %41, %42 : vector<8x128xi32>
    %c1073741824_i32 = arith.constant 1073741824 : i32
    %44 = vector.broadcast %c1073741824_i32 : i32 to vector<8x128xi32>
    %45 = arith.andi %39, %44 : vector<8x128xi32>
    %c0_i32_8 = arith.constant 0 : i32
    %46 = vector.broadcast %c0_i32_8 : i32 to vector<8x128xi32>
    %47 = arith.cmpi eq, %45, %46 : vector<8x128xi32>
    %cst_9 = arith.constant 2.000000e+00 : f32
    %48 = vector.broadcast %cst_9 : f32 to vector<8x128xf32>
    %49 = arith.mulf %15, %48 : vector<8x128xf32>
    %cst_10 = arith.constant 0.000000e+00 : f32
    %50 = vector.broadcast %cst_10 : f32 to vector<8x128xf32>
    %51 = arith.select %43, %49, %50 : vector<8x128xi1>, vector<8x128xf32>
    %cst_11 = arith.constant dense<0.000000e+00> : vector<128xf32>
    %52 = vector.multi_reduction <add>, %51, %cst_11 [0] : vector<8x128xf32> to vector<128xf32>
    %53 = vector.shape_cast %52 : vector<128xf32> to vector<1x128xf32>
    %cst_12 = arith.constant 1.250000e-01 : f32
    %54 = vector.broadcast %cst_12 : f32 to vector<1x128xf32>
    %55 = arith.mulf %53, %54 : vector<1x128xf32>
    %56 = arith.mulf %51, %51 : vector<8x128xf32>
    %cst_13 = arith.constant dense<0.000000e+00> : vector<128xf32>
    %57 = vector.multi_reduction <add>, %56, %cst_13 [0] : vector<8x128xf32> to vector<128xf32>
    %58 = vector.shape_cast %57 : vector<128xf32> to vector<1x128xf32>
    %cst_14 = arith.constant 1.250000e-01 : f32
    %59 = vector.broadcast %cst_14 : f32 to vector<1x128xf32>
    %60 = arith.mulf %58, %59 : vector<1x128xf32>
    %61 = arith.mulf %55, %55 : vector<1x128xf32>
    %62 = arith.subf %60, %61 : vector<1x128xf32>
    %cst_15 = arith.constant 0.000000e+00 : f32
    %63 = vector.broadcast %cst_15 : f32 to vector<1x128xf32>
    %64 = arith.maximumf %62, %63 : vector<1x128xf32>
    %65 = vector.broadcast %55 : vector<1x128xf32> to vector<8x128xf32>
    %66 = arith.subf %51, %65 : vector<8x128xf32>
    %cst_16 = arith.constant 9.99999974E-6 : f32
    %67 = vector.broadcast %cst_16 : f32 to vector<1x128xf32>
    %68 = arith.addf %64, %67 : vector<1x128xf32>
    %69 = math.rsqrt %68 : vector<1x128xf32>
    %70 = vector.broadcast %69 : vector<1x128xf32> to vector<8x128xf32>
    %71 = arith.mulf %66, %70 : vector<8x128xf32>
    %72 = vector.broadcast %3 : vector<1x128xf32> to vector<8x128xf32>
    %73 = arith.mulf %71, %72 : vector<8x128xf32>
    %74 = vector.broadcast %4 : vector<1x128xf32> to vector<8x128xf32>
    %75 = arith.addf %73, %74 : vector<8x128xf32>
    %cst_17 = arith.constant 0.000000e+00 : f32
    %76 = vector.broadcast %cst_17 : f32 to vector<8x128xf32>
    %77 = arith.maximumf %75, %76 : vector<8x128xf32>
    %78 = arith.truncf %77 : vector<8x128xf32> to vector<8x128xbf16>
    %c0_18 = arith.constant 0 : index
    %c0_19 = arith.constant 0 : index
    %79 = vector.load %arg4[%c0_18, %c0_19] : memref<128x128xf32, #tpu.memory_space<vmem>>, vector<128x128xf32>
    %80 = arith.truncf %79 : vector<128x128xf32> to vector<128x128xbf16>
    %cst_20 = arith.constant dense<0.000000e+00> : vector<8x128xf32>
    %81 = tpu.matmul %78, %80, %cst_20 {dimension_numbers = #tpu.dot_dimension_numbers<[1], [0], [0], [1], [0, 0, 1, 1], [], []>} : vector<8x128xbf16>, vector<128x128xbf16>, vector<8x128xf32> -> vector<8x128xf32>
    %82 = vector.broadcast %5 : vector<1x128xf32> to vector<8x128xf32>
    %83 = arith.addf %81, %82 : vector<8x128xf32>
    %cst_21 = arith.constant 0.000000e+00 : f32
    %84 = vector.broadcast %cst_21 : f32 to vector<8x128xf32>
    %85 = arith.maximumf %83, %84 : vector<8x128xf32>
    %cst_22 = arith.constant 2.000000e+00 : f32
    %86 = vector.broadcast %cst_22 : f32 to vector<8x128xf32>
    %87 = arith.mulf %85, %86 : vector<8x128xf32>
    %cst_23 = arith.constant 0.000000e+00 : f32
    %88 = vector.broadcast %cst_23 : f32 to vector<8x128xf32>
    %89 = arith.select %47, %87, %88 : vector<8x128xi1>, vector<8x128xf32>
    %cst_24 = arith.constant dense<0.000000e+00> : vector<128xf32>
    %90 = vector.multi_reduction <add>, %89, %cst_24 [0] : vector<8x128xf32> to vector<128xf32>
    %91 = vector.shape_cast %90 : vector<128xf32> to vector<1x128xf32>
    %cst_25 = arith.constant 1.250000e-01 : f32
    %92 = vector.broadcast %cst_25 : f32 to vector<1x128xf32>
    %93 = arith.mulf %91, %92 : vector<1x128xf32>
    %94 = arith.mulf %89, %89 : vector<8x128xf32>
    %cst_26 = arith.constant dense<0.000000e+00> : vector<128xf32>
    %95 = vector.multi_reduction <add>, %94, %cst_26 [0] : vector<8x128xf32> to vector<128xf32>
    %96 = vector.shape_cast %95 : vector<128xf32> to vector<1x128xf32>
    %cst_27 = arith.constant 1.250000e-01 : f32
    %97 = vector.broadcast %cst_27 : f32 to vector<1x128xf32>
    %98 = arith.mulf %96, %97 : vector<1x128xf32>
    %99 = arith.mulf %93, %93 : vector<1x128xf32>
    %100 = arith.subf %98, %99 : vector<1x128xf32>
    %cst_28 = arith.constant 0.000000e+00 : f32
    %101 = vector.broadcast %cst_28 : f32 to vector<1x128xf32>
    %102 = arith.maximumf %100, %101 : vector<1x128xf32>
    %103 = vector.broadcast %93 : vector<1x128xf32> to vector<8x128xf32>
    %104 = arith.subf %89, %103 : vector<8x128xf32>
    %cst_29 = arith.constant 9.99999974E-6 : f32
    %105 = vector.broadcast %cst_29 : f32 to vector<1x128xf32>
    %106 = arith.addf %102, %105 : vector<1x128xf32>
    %107 = math.rsqrt %106 : vector<1x128xf32>
    %108 = vector.broadcast %107 : vector<1x128xf32> to vector<8x128xf32>
    %109 = arith.mulf %104, %108 : vector<8x128xf32>
    %110 = vector.broadcast %6 : vector<1x128xf32> to vector<8x128xf32>
    %111 = arith.mulf %109, %110 : vector<8x128xf32>
    %112 = vector.broadcast %7 : vector<1x128xf32> to vector<8x128xf32>
    %113 = arith.addf %111, %112 : vector<8x128xf32>
    %c0_30 = arith.constant 0 : index
    %c0_31 = arith.constant 0 : index
    %114 = vector.load %arg6[%c0_30, %c0_31] : memref<8x128xf32, #tpu.memory_space<vmem>>, vector<8x128xf32>
    tpu.vector_store %arg6[%c0_30, %c0_31], %113 {strides = array<i32>} : memref<8x128xf32, #tpu.memory_space<vmem>>, vector<8x128xf32>,
    return
  }
  func.func @transform_0(%arg0: i32, %arg1: memref<1xi32, #tpu.memory_space<smem>>) -> (i32, i32) {
    %c0_i32 = arith.constant 0 : i32
    %c0_i32_0 = arith.constant 0 : i32
    %c0_i32_1 = arith.constant 0 : i32
    return %c0_i32, %c0_i32_0 : i32, i32
  }
  func.func @transform_1(%arg0: i32, %arg1: memref<1xi32, #tpu.memory_space<smem>>) -> (i32, i32) {
    %c0_i32 = arith.constant 0 : i32
    %c0_i32_0 = arith.constant 0 : i32
    %c0_i32_1 = arith.constant 0 : i32
    return %c0_i32, %c0_i32_0 : i32, i32
  }
  func.func @transform_2(%arg0: i32, %arg1: memref<1xi32, #tpu.memory_space<smem>>) -> (i32, i32) {
    %c0_i32 = arith.constant 0 : i32
    %c0_i32_0 = arith.constant 0 : i32
    %c0_i32_1 = arith.constant 0 : i32
    return %c0_i32, %c0_i32_0 : i32, i32
  }
  func.func @transform_3(%arg0: i32, %arg1: memref<1xi32, #tpu.memory_space<smem>>) -> (i32, i32) {
    %c0_i32 = arith.constant 0 : i32
    %c0_i32_0 = arith.constant 0 : i32
    %c0_i32_1 = arith.constant 0 : i32
    return %c0_i32, %c0_i32_0 : i32, i32
  }
  func.func @transform_4(%arg0: i32, %arg1: memref<1xi32, #tpu.memory_space<smem>>) -> (i32, i32) {
    %c0_i32 = arith.constant 0 : i32
    %c0_i32_0 = arith.constant 0 : i32
    %c0_i32_1 = arith.constant 0 : i32
    return %c0_i32, %c0_i32_0 : i32, i32
  }
}

</mosaic_0001>

<llo_original>
// kernel: tpu_custom_call.1
$region0: #{tpu_custom_call.1}
  #allocation0 [shape = 'u32[]', space=smem, size = 0x4, offset = 0x4, fixed_abs, tag = 'smem constant byte address 0x4 - core index']
  #allocation1 [shape = 'u32[144,128]{1,0:T(1,128)}', space=vmem, size = 0x12000, scoped, tag = 'internal scratch']
  #allocation2 [shape = 's32[1]{0}', space=sflag, size = 0x4, scoped, tag = 'scoped memory for tpu_custom_call.1']
  #allocation3 [shape = 's32[1]{0:T(128)S(6)}', space=smem, size = 0x200, scoped, tag = 'prefetched SMEM operand 0']
  %s0 = inlined_call_operand.<no memory space> [shape: s32[1], index: 0, kind: input, shape index: {}]
  %s1 = inlined_call_operand.hbm [shape: f32[8,896], index: 1, kind: input, shape index: {}]
  %s2 = inlined_call_operand.hbm [shape: f32[896,128], index: 2, kind: input, shape index: {}]
  %s3 = inlined_call_operand.hbm [shape: f32[128,128], index: 3, kind: input, shape index: {}]
  %s4 = inlined_call_operand.hbm [shape: f32[8,128], index: 4, kind: input, shape index: {}]
  %s5 = inlined_call_operand.hbm [shape: f32[8,128], index: 5, kind: output, shape index: {}]
  %s6 = sld [smem:[#allocation0]]
  $region42: #{tpu_custom_call.1} parent=0
    _
  %s8 = ssub.s32 1, %s6
  %s9 = scalar_select 0, %s8, %s6
  %10 = sst [smem:[#allocation3]] %s0
  $region1: #{tpu_custom_call.1} parent=0
    #allocation4 [shape = 'u8[28672]{0}', space=vmem, size = 0x7000, scoped, tag = 'input window, operand 1, single buffered']
    #allocation5 [shape = 's32[1]{0}', space=sflag, size = 0x4, scoped, tag = 'scoped memory for tpu_custom_call.1']
    #allocation6 [shape = 's32[1]{0}', space=sflag, size = 0x4, scoped, tag = 'scoped memory for tpu_custom_call.1']
    #allocation7 [shape = 'u8[458752]{0}', space=vmem, size = 0x70000, scoped, tag = 'input window, operand 2, single buffered']
    #allocation8 [shape = 's32[1]{0}', space=sflag, size = 0x4, scoped, tag = 'scoped memory for tpu_custom_call.1']
    #allocation9 [shape = 'u8[65536]{0}', space=vmem, size = 0x10000, scoped, tag = 'input window, operand 3, single buffered']
    #allocation10 [shape = 'u8[4096]{0}', space=vmem, size = 0x1000, scoped, tag = 'input window, operand 4, single buffered']
    #allocation11 [shape = 's32[1]{0}', space=sflag, size = 0x4, scoped, tag = 'scoped memory for tpu_custom_call.1']
    #allocation12 [shape = 'u8[4096]{0}', space=vmem, size = 0x1000, scoped, tag = 'output window, operand 0, single buffered']
    %11 = vsyncpa [#allocation5], 0
    %12 = vsyncpa [#allocation8], 0
    %13 = vsyncpa [#allocation11], 0
    %14 = vsyncpa [#allocation6], 0
    // Predicated region
    $region2: #{tpu_custom_call.1} parent=1 // pred_check
      _
    $region3: #{tpu_custom_call.1} parent=1 // pred_check_branch
      %16 = sbr.rel (0) target = $region5
    $region4: #{tpu_custom_call.1} parent=1 // pred_region
      %s18 = ssub.s32 896, 896
      %19 = vsyncadd [#allocation5], %s18
      %s21 = sshll.u32 [#allocation4], 4
      %s22 = int_to_ptr.vmem [resolvable:$true] %s21
      %24 = dma.hbm_to_vmem [thread:$0]  %s1, 896, %s22, [#allocation5]
    $region5: #{tpu_custom_call.1} parent=1 // pred_fallthru
      _
    // Predicated region
    $region6: #{tpu_custom_call.1} parent=1 // pred_check
      _
    $region7: #{tpu_custom_call.1} parent=1 // pred_check_branch
      %26 = sbr.rel (0) target = $region9
    $region8: #{tpu_custom_call.1} parent=1 // pred_region
      %s28 = ssub.s32 14336, 14336
      %29 = vsyncadd [#allocation8], %s28
      %s30 = sshll.u32 [#allocation7], 4
      %s31 = int_to_ptr.vmem [resolvable:$true] %s30
      %36 = dma.hbm_to_vmem [thread:$0]  %s2, 14336, %s31, [#allocation8], 128, 128, 8
    $region9: #{tpu_custom_call.1} parent=1 // pred_fallthru
      _
    // Predicated region
    $region10: #{tpu_custom_call.1} parent=1 // pred_check
      _
    $region11: #{tpu_custom_call.1} parent=1 // pred_check_branch
      %38 = sbr.rel (0) target = $region13
    $region12: #{tpu_custom_call.1} parent=1 // pred_region
      %s40 = ssub.s32 2048, 2048
      %41 = vsyncadd [#allocation8], %s40
      %s42 = sshll.u32 [#allocation9], 4
      %s43 = int_to_ptr.vmem [resolvable:$true] %s42
      %48 = dma.hbm_to_vmem [thread:$0]  %s3, 2048, %s43, [#allocation8], 128, 128, 8
    $region13: #{tpu_custom_call.1} parent=1 // pred_fallthru
      _
    // Predicated region
    $region14: #{tpu_custom_call.1} parent=1 // pred_check
      _
    $region15: #{tpu_custom_call.1} parent=1 // pred_check_branch
      %50 = sbr.rel (0) target = $region17
    $region16: #{tpu_custom_call.1} parent=1 // pred_region
      %s52 = ssub.s32 128, 128
      %53 = vsyncadd [#allocation11], %s52
      %s55 = sshll.u32 [#allocation10], 4
      %s56 = int_to_ptr.vmem [resolvable:$true] %s55
      %58 = dma.hbm_to_vmem [thread:$0]  %s4, 128, %s56, [#allocation11]
    $region17: #{tpu_custom_call.1} parent=1 // pred_fallthru
      _
    // Predicated region
    $region18: #{tpu_custom_call.1} parent=1 // pred_check
      _
    $region19: #{tpu_custom_call.1} parent=1 // pred_check_branch
      %60 = sbr.rel (0) target = $region21
    $region20: #{tpu_custom_call.1} parent=1 // pred_region
      %61 = dma.done [#allocation5], 896
    $region21: #{tpu_custom_call.1} parent=1 // pred_fallthru
      _
    // Predicated region
    $region22: #{tpu_custom_call.1} parent=1 // pred_check
      _
    $region23: #{tpu_custom_call.1} parent=1 // pred_check_branch
      %63 = sbr.rel (0) target = $region25
    $region24: #{tpu_custom_call.1} parent=1 // pred_region
      %64 = dma.done [#allocation8], 14336
    $region25: #{tpu_custom_call.1} parent=1 // pred_fallthru
      _
    // Predicated region
    $region26: #{tpu_custom_call.1} parent=1 // pred_check
      _
    $region27: #{tpu_custom_call.1} parent=1 // pred_check_branch
      %66 = sbr.rel (0) target = $region29
    $region28: #{tpu_custom_call.1} parent=1 // pred_region
      %67 = dma.done [#allocation8], 2048
    $region29: #{tpu_custom_call.1} parent=1 // pred_fallthru
      _
    // Predicated region
    $region30: #{tpu_custom_call.1} parent=1 // pred_check
      _
    $region31: #{tpu_custom_call.1} parent=1 // pred_check_branch
      %69 = sbr.rel (0) target = $region33
    $region32: #{tpu_custom_call.1} parent=1 // pred_region
      %70 = dma.done [#allocation11], 128
    $region33: #{tpu_custom_call.1} parent=1 // pred_fallthru
      _
    %v72 = vld [vmem:[#allocation4] sm:$0xff]
    %v73 = vld [vmem:[#allocation4 + $0x8] sm:$0xff]
    %v74 = vld [vmem:[#allocation4 + $0x10] sm:$0xff]
    %v75 = vld [vmem:[#allocation4 + $0x18] sm:$0xff]
    %v76 = vld [vmem:[#allocation4 + $0x20] sm:$0xff]
    %v77 = vld [vmem:[#allocation4 + $0x28] sm:$0xff]
    %v78 = vld [vmem:[#allocation4 + $0x30] sm:$0xff]
    %v79 = vld [vmem:[#allocation10] sm:$0xff]
    %v80 = vpack.c.bf16 %v72, %v72
    %v81 = vpack.c.bf16 %v73, %v73
    %v82 = vpack.c.bf16 %v74, %v74
    %v83 = vpack.c.bf16 %v75, %v75
    %v84 = vpack.c.bf16 %v76, %v76
    %v85 = vpack.c.bf16 %v77, %v77
    %v86 = vpack.c.bf16 %v78, %v78
    %v87 = vld [vmem:[#allocation7] sm:$0xff]
    %v88 = vld [vmem:[#allocation7 + $0x8] sm:$0xff]
    %v89 = vld [vmem:[#allocation7 + $0x10] sm:$0xff]
    %v90 = vld [vmem:[#allocation7 + $0x18] sm:$0xff]
    %v91 = vld [vmem:[#allocation7 + $0x20] sm:$0xff]
    %v92 = vld [vmem:[#allocation7 + $0x28] sm:$0xff]
    %v93 = vld [vmem:[#allocation7 + $0x30] sm:$0xff]
    %v94 = vld [vmem:[#allocation7 + $0x38] sm:$0xff]
    %v95 = vld [vmem:[#allocation7 + $0x40] sm:$0xff]
    %v96 = vld [vmem:[#allocation7 + $0x48] sm:$0xff]
    %v97 = vld [vmem:[#allocation7 + $0x50] sm:$0xff]
    %v98 = vld [vmem:[#allocation7 + $0x58] sm:$0xff]
    %v99 = vld [vmem:[#allocation7 + $0x60] sm:$0xff]
    %v100 = vld [vmem:[#allocation7 + $0x68] sm:$0xff]
    %v101 = vld [vmem:[#allocation7 + $0x70] sm:$0xff]
    %v102 = vld [vmem:[#allocation7 + $0x78] sm:$0xff]
    %v103 = vld [vmem:[#allocation7 + $0x80] sm:$0xff]
    %v104 = vld [vmem:[#allocation7 + $0x88] sm:$0xff]
    %v105 = vld [vmem:[#allocation7 + $0x90] sm:$0xff]
    %v106 = vld [vmem:[#allocation7 + $0x98] sm:$0xff]
    %v107 = vld [vmem:[#allocation7 + $0xa0] sm:$0xff]
    %v108 = vld [vmem:[#allocation7 + $0xa8] sm:$0xff]
    %v109 = vld [vmem:[#allocation7 + $0xb0] sm:$0xff]
    %v110 = vld [vmem:[#allocation7 + $0xb8] sm:$0xff]
    %v111 = vld [vmem:[#allocation7 + $0xc0] sm:$0xff]
    %v112 = vld [vmem:[#allocation7 + $0xc8] sm:$0xff]
    %v113 = vld [vmem:[#allocation7 + $0xd0] sm:$0xff]
    %v114 = vld [vmem:[#allocation7 + $0xd8] sm:$0xff]
    %v115 = vld [vmem:[#allocation7 + $0xe0] sm:$0xff]
    %v116 = vld [vmem:[#allocation7 + $0xe8] sm:$0xff]
    %v117 = vld [vmem:[#allocation7 + $0xf0] sm:$0xff]
    %v118 = vld [vmem:[#allocation7 + $0xf8] sm:$0xff]
    %v119 = vld [vmem:[#allocation7 + $0x100] sm:$0xff]
    %v120 = vld [vmem:[#allocation7 + $0x108] sm:$0xff]
    %v121 = vld [vmem:[#allocation7 + $0x110] sm:$0xff]
    %v122 = vld [vmem:[#allocation7 + $0x118] sm:$0xff]
    %v123 = vld [vmem:[#allocation7 + $0x120] sm:$0xff]
    %v124 = vld [vmem:[#allocation7 + $0x128] sm:$0xff]
    %v125 = vld [vmem:[#allocation7 + $0x130] sm:$0xff]
    %v126 = vld [vmem:[#allocation7 + $0x138] sm:$0xff]
    %v127 = vld [vmem:[#allocation7 + $0x140] sm:$0xff]
    %v128 = vld [vmem:[#allocation7 + $0x148] sm:$0xff]
    %v129 = vld [vmem:[#allocation7 + $0x150] sm:$0xff]
    %v130 = vld [vmem:[#allocation7 + $0x158] sm:$0xff]
    %v131 = vld [vmem:[#allocation7 + $0x160] sm:$0xff]
    %v132 = vld [vmem:[#allocation7 + $0x168] sm:$0xff]
    %v133 = vld [vmem:[#allocation7 + $0x170] sm:$0xff]
    %v134 = vld [vmem:[#allocation7 + $0x178] sm:$0xff]
    %v135 = vld [vmem:[#allocation7 + $0x180] sm:$0xff]
    %v136 = vld [vmem:[#allocation7 + $0x188] sm:$0xff]
    %v137 = vld [vmem:[#allocation7 + $0x190] sm:$0xff]
    %v138 = vld [vmem:[#allocation7 + $0x198] sm:$0xff]
    %v139 = vld [vmem:[#allocation7 + $0x1a0] sm:$0xff]
    %v140 = vld [vmem:[#allocation7 + $0x1a8] sm:$0xff]
    %v141 = vld [vmem:[#allocation7 + $0x1b0] sm:$0xff]
    %v142 = vld [vmem:[#allocation7 + $0x1b8] sm:$0xff]
    %v143 = vld [vmem:[#allocation7 + $0x1c0] sm:$0xff]
    %v144 = vld [vmem:[#allocation7 + $0x1c8] sm:$0xff]
    %v145 = vld [vmem:[#allocation7 + $0x1d0] sm:$0xff]
    %v146 = vld [vmem:[#allocation7 + $0x1d8] sm:$0xff]
    %v147 = vld [vmem:[#allocation7 + $0x1e0] sm:$0xff]
    %v148 = vld [vmem:[#allocation7 + $0x1e8] sm:$0xff]
    %v149 = vld [vmem:[#allocation7 + $0x1f0] sm:$0xff]
    %v150 = vld [vmem:[#allocation7 + $0x1f8] sm:$0xff]
    %v151 = vld [vmem:[#allocation7 + $0x200] sm:$0xff]
    %v152 = vld [vmem:[#allocation7 + $0x208] sm:$0xff]
    %v153 = vld [vmem:[#allocation7 + $0x210] sm:$0xff]
    %v154 = vld [vmem:[#allocation7 + $0x218] sm:$0xff]
    %v155 = vld [vmem:[#allocation7 + $0x220] sm:$0xff]
    %v156 = vld [vmem:[#allocation7 + $0x228] sm:$0xff]
    %v157 = vld [vmem:[#allocation7 + $0x230] sm:$0xff]
    %v158 = vld [vmem:[#allocation7 + $0x238] sm:$0xff]
    %v159 = vld [vmem:[#allocation7 + $0x240] sm:$0xff]
    %v160 = vld [vmem:[#allocation7 + $0x248] sm:$0xff]
    %v161 = vld [vmem:[#allocation7 + $0x250] sm:$0xff]
    %v162 = vld [vmem:[#allocation7 + $0x258] sm:$0xff]
    %v163 = vld [vmem:[#allocation7 + $0x260] sm:$0xff]
    %v164 = vld [vmem:[#allocation7 + $0x268] sm:$0xff]
    %v165 = vld [vmem:[#allocation7 + $0x270] sm:$0xff]
    %v166 = vld [vmem:[#allocation7 + $0x278] sm:$0xff]
    %v167 = vld [vmem:[#allocation7 + $0x280] sm:$0xff]
    %v168 = vld [vmem:[#allocation7 + $0x288] sm:$0xff]
    %v169 = vld [vmem:[#allocation7 + $0x290] sm:$0xff]
    %v170 = vld [vmem:[#allocation7 + $0x298] sm:$0xff]
    %v171 = vld [vmem:[#allocation7 + $0x2a0] sm:$0xff]
    %v172 = vld [vmem:[#allocation7 + $0x2a8] sm:$0xff]
    %v173 = vld [vmem:[#allocation7 + $0x2b0] sm:$0xff]
    %v174 = vld [vmem:[#allocation7 + $0x2b8] sm:$0xff]
    %v175 = vld [vmem:[#allocation7 + $0x2c0] sm:$0xff]
    %v176 = vld [vmem:[#allocation7 + $0x2c8] sm:$0xff]
    %v177 = vld [vmem:[#allocation7 + $0x2d0] sm:$0xff]
    %v178 = vld [vmem:[#allocation7 + $0x2d8] sm:$0xff]
    %v179 = vld [vmem:[#allocation7 + $0x2e0] sm:$0xff]
    %v180 = vld [vmem:[#allocation7 + $0x2e8] sm:$0xff]
    %v181 = vld [vmem:[#allocation7 + $0x2f0] sm:$0xff]
    %v182 = vld [vmem:[#allocation7 + $0x2f8] sm:$0xff]
    %v183 = vld [vmem:[#allocation7 + $0x300] sm:$0xff]
    %v184 = vld [vmem:[#allocation7 + $0x308] sm:$0xff]
    %v185 = vld [vmem:[#allocation7 + $0x310] sm:$0xff]
    %v186 = vld [vmem:[#allocation7 + $0x318] sm:$0xff]
    %v187 = vld [vmem:[#allocation7 + $0x320] sm:$0xff]
    %v188 = vld [vmem:[#allocation7 + $0x328] sm:$0xff]
    %v189 = vld [vmem:[#allocation7 + $0x330] sm:$0xff]
    %v190 = vld [vmem:[#allocation7 + $0x338] sm:$0xff]
    %v191 = vld [vmem:[#allocation7 + $0x340] sm:$0xff]
    %v192 = vld [vmem:[#allocation7 + $0x348] sm:$0xff]
    %v193 = vld [vmem:[#allocation7 + $0x350] sm:$0xff]
    %v194 = vld [vmem:[#allocation7 + $0x358] sm:$0xff]
    %v195 = vld [vmem:[#allocation7 + $0x360] sm:$0xff]
    %v196 = vld [vmem:[#allocation7 + $0x368] sm:$0xff]
    %v197 = vld [vmem:[#allocation7 + $0x370] sm:$0xff]
    %v198 = vld [vmem:[#allocation7 + $0x378] sm:$0xff]
    %v199 = vpack.c.bf16 %v88, %v87
    %v200 = vpack.c.bf16 %v90, %v89
    %v201 = vpack.c.bf16 %v92, %v91
    %v202 = vpack.c.bf16 %v94, %v93
    %v203 = vpack.c.bf16 %v96, %v95
    %v204 = vpack.c.bf16 %v98, %v97
    %v205 = vpack.c.bf16 %v100, %v99
    %v206 = vpack.c.bf16 %v102, %v101
    %v207 = vpack.c.bf16 %v104, %v103
    %v208 = vpack.c.bf16 %v106, %v105
    %v209 = vpack.c.bf16 %v108, %v107
    %v210 = vpack.c.bf16 %v110, %v109
    %v211 = vpack.c.bf16 %v112, %v111
    %v212 = vpack.c.bf16 %v114, %v113
    %v213 = vpack.c.bf16 %v116, %v115
    %v214 = vpack.c.bf16 %v118, %v117
    %v215 = vpack.c.bf16 %v120, %v119
    %v216 = vpack.c.bf16 %v122, %v121
    %v217 = vpack.c.bf16 %v124, %v123
    %v218 = vpack.c.bf16 %v126, %v125
    %v219 = vpack.c.bf16 %v128, %v127
    %v220 = vpack.c.bf16 %v130, %v129
    %v221 = vpack.c.bf16 %v132, %v131
    %v222 = vpack.c.bf16 %v134, %v133
    %v223 = vpack.c.bf16 %v136, %v135
    %v224 = vpack.c.bf16 %v138, %v137
    %v225 = vpack.c.bf16 %v140, %v139
    %v226 = vpack.c.bf16 %v142, %v141
    %v227 = vpack.c.bf16 %v144, %v143
    %v228 = vpack.c.bf16 %v146, %v145
    %v229 = vpack.c.bf16 %v148, %v147
    %v230 = vpack.c.bf16 %v150, %v149
    %v231 = vpack.c.bf16 %v152, %v151
    %v232 = vpack.c.bf16 %v154, %v153
    %v233 = vpack.c.bf16 %v156, %v155
    %v234 = vpack.c.bf16 %v158, %v157
    %v235 = vpack.c.bf16 %v160, %v159
    %v236 = vpack.c.bf16 %v162, %v161
    %v237 = vpack.c.bf16 %v164, %v163
    %v238 = vpack.c.bf16 %v166, %v165
    %v239 = vpack.c.bf16 %v168, %v167
    %v240 = vpack.c.bf16 %v170, %v169
    %v241 = vpack.c.bf16 %v172, %v171
    %v242 = vpack.c.bf16 %v174, %v173
    %v243 = vpack.c.bf16 %v176, %v175
    %v244 = vpack.c.bf16 %v178, %v177
    %v245 = vpack.c.bf16 %v180, %v179
    %v246 = vpack.c.bf16 %v182, %v181
    %v247 = vpack.c.bf16 %v184, %v183
    %v248 = vpack.c.bf16 %v186, %v185
    %v249 = vpack.c.bf16 %v188, %v187
    %v250 = vpack.c.bf16 %v190, %v189
    %v251 = vpack.c.bf16 %v192, %v191
    %v252 = vpack.c.bf16 %v194, %v193
    %v253 = vpack.c.bf16 %v196, %v195
    %v254 = vpack.c.bf16 %v198, %v197
    %v255 = vlaneseq
    %v256 = vshrl.u32 %v255, 7
    %v257 = vsub.s32 0, %v256
    %v258 = vrot.slane %v79, %v257
    %259 = vmatprep.subr.bf16.mxu0 0
    %260 = vmatpush1.bf16.msra.mxu0 %v206
    %261 = vmatprep.subr.bf16.mxu0 0
    %262 = vmatpush1.bf16.msra.mxu0 %v205
    %263 = vmatprep.subr.bf16.mxu0 0
    %264 = vmatpush1.bf16.msra.mxu0 %v204
    %265 = vmatprep.subr.bf16.mxu0 0
    %266 = vmatpush1.bf16.msra.mxu0 %v203
    %267 = vmatprep.subr.bf16.mxu0 0
    %268 = vmatpush1.bf16.msra.mxu0 %v202
    %269 = vmatprep.subr.bf16.mxu0 0
    %270 = vmatpush1.bf16.msra.mxu0 %v201
    %271 = vmatprep.subr.bf16.mxu0 0
    %272 = vmatpush1.bf16.msra.mxu0 %v200
    %273 = vmatprep.subr.bf16.mxu0 0
    %274 = vmatpush1.bf16.msra.mxu0 %v199
    %275 = vmatprep.subr.bf16.mxu0 0
    %276 = vmatpush2.bf16.msra.mxu0 %v214
    %277 = vmatprep.subr.bf16.mxu0 0
    %278 = vmatpush2.bf16.msra.mxu0 %v213
    %279 = vmatprep.subr.bf16.mxu0 0
    %280 = vmatpush2.bf16.msra.mxu0 %v212
    %281 = vmatprep.subr.bf16.mxu0 0
    %282 = vmatpush2.bf16.msra.mxu0 %v211
    %283 = vmatprep.subr.bf16.mxu0 0
    %284 = vmatpush2.bf16.msra.mxu0 %v210
    %285 = vmatprep.subr.bf16.mxu0 0
    %286 = vmatpush2.bf16.msra.mxu0 %v209
    %287 = vmatprep.subr.bf16.mxu0 0
    %288 = vmatpush2.bf16.msra.mxu0 %v208
    %289 = vmatprep.subr.bf16.mxu0 0
    %290 = vmatpush2.bf16.msra.mxu0 %v207
    %291 = vmatprep.mubr.bf16.mxu0 %v81
    %292 = vmatmul.mubr.bf16.gmra.mxu0 %v80
    %v293 = vpop.f32.mrf.mxu0
    %v294 = vadd.f32 %v258, %v293
    %v295 = vpop.f32.mrf.mxu0
    %v296 = vpop.f32.mrf.mxu0
    %v297 = vpop.f32.mrf.mxu0
    %298 = vdwg.mxu0
    %299 = vmatprep.subr.bf16.mxu0 0
    %300 = vmatpush1.bf16.msra.mxu0 %v222
    %301 = vmatprep.subr.bf16.mxu0 0
    %302 = vmatpush1.bf16.msra.mxu0 %v221
    %303 = vmatprep.subr.bf16.mxu0 0
    %304 = vmatpush1.bf16.msra.mxu0 %v220
    %305 = vmatprep.subr.bf16.mxu0 0
    %306 = vmatpush1.bf16.msra.mxu0 %v219
    %307 = vmatprep.subr.bf16.mxu0 0
    %308 = vmatpush1.bf16.msra.mxu0 %v218
    %309 = vmatprep.subr.bf16.mxu0 0
    %310 = vmatpush1.bf16.msra.mxu0 %v217
    %311 = vmatprep.subr.bf16.mxu0 0
    %312 = vmatpush1.bf16.msra.mxu0 %v216
    %313 = vmatprep.subr.bf16.mxu0 0
    %314 = vmatpush1.bf16.msra.mxu0 %v215
    %315 = vmatprep.subr.bf16.mxu0 0
    %316 = vmatpush2.bf16.msra.mxu0 %v230
    %317 = vmatprep.subr.bf16.mxu0 0
    %318 = vmatpush2.bf16.msra.mxu0 %v229
    %319 = vmatprep.subr.bf16.mxu0 0
    %320 = vmatpush2.bf16.msra.mxu0 %v228
    %321 = vmatprep.subr.bf16.mxu0 0
    %322 = vmatpush2.bf16.msra.mxu0 %v227
    %323 = vmatprep.subr.bf16.mxu0 0
    %324 = vmatpush2.bf16.msra.mxu0 %v226
    %325 = vmatprep.subr.bf16.mxu0 0
    %326 = vmatpush2.bf16.msra.mxu0 %v225
    %327 = vmatprep.subr.bf16.mxu0 0
    %328 = vmatpush2.bf16.msra.mxu0 %v224
    %329 = vmatprep.subr.bf16.mxu0 0
    %330 = vmatpush2.bf16.msra.mxu0 %v223
    %331 = vmatprep.mubr.bf16.mxu0 %v83
    %332 = vmatmul.mubr.bf16.gmra.mxu0 %v82
    %v333 = vpop.f32.mrf.mxu0
    %v334 = vadd.f32 %v294, %v333
    %v335 = vpop.f32.mrf.mxu0
    %v336 = vpop.f32.mrf.mxu0
    %v337 = vpop.f32.mrf.mxu0
    %338 = vdwg.mxu0
    %339 = vmatprep.subr.bf16.mxu0 0
    %340 = vmatpush1.bf16.msra.mxu0 %v238
    %341 = vmatprep.subr.bf16.mxu0 0
    %342 = vmatpush1.bf16.msra.mxu0 %v237
    %343 = vmatprep.subr.bf16.mxu0 0
    %344 = vmatpush1.bf16.msra.mxu0 %v236
    %345 = vmatprep.subr.bf16.mxu0 0
    %346 = vmatpush1.bf16.msra.mxu0 %v235
    %347 = vmatprep.subr.bf16.mxu0 0
    %348 = vmatpush1.bf16.msra.mxu0 %v234
    %349 = vmatprep.subr.bf16.mxu0 0
    %350 = vmatpush1.bf16.msra.mxu0 %v233
    %351 = vmatprep.subr.bf16.mxu0 0
    %352 = vmatpush1.bf16.msra.mxu0 %v232
    %353 = vmatprep.subr.bf16.mxu0 0
    %354 = vmatpush1.bf16.msra.mxu0 %v231
    %355 = vmatprep.subr.bf16.mxu0 0
    %356 = vmatpush2.bf16.msra.mxu0 %v246
    %357 = vmatprep.subr.bf16.mxu0 0
    %358 = vmatpush2.bf16.msra.mxu0 %v245
    %359 = vmatprep.subr.bf16.mxu0 0
    %360 = vmatpush2.bf16.msra.mxu0 %v244
    %361 = vmatprep.subr.bf16.mxu0 0
    %362 = vmatpush2.bf16.msra.mxu0 %v243
    %363 = vmatprep.subr.bf16.mxu0 0
    %364 = vmatpush2.bf16.msra.mxu0 %v242
    %365 = vmatprep.subr.bf16.mxu0 0
    %366 = vmatpush2.bf16.msra.mxu0 %v241
    %367 = vmatprep.subr.bf16.mxu0 0
    %368 = vmatpush2.bf16.msra.mxu0 %v240
    %369 = vmatprep.subr.bf16.mxu0 0
    %370 = vmatpush2.bf16.msra.mxu0 %v239
    %371 = vmatprep.mubr.bf16.mxu0 %v85
    %372 = vmatmul.mubr.bf16.gmra.mxu0 %v84
    %v373 = vpop.f32.mrf.mxu0
    %v374 = vadd.f32 %v334, %v373
    %v375 = vpop.f32.mrf.mxu0
    %v376 = vpop.f32.mrf.mxu0
    %v377 = vpop.f32.mrf.mxu0
    %378 = vdwg.mxu0
    %379 = vmatprep.subr.bf16.mxu0 0
    %380 = vmatpush1.bf16.msra.mxu0 %v254
    %381 = vmatprep.subr.bf16.mxu0 0
    %382 = vmatpush1.bf16.msra.mxu0 %v253
    %383 = vmatprep.subr.bf16.mxu0 0
    %384 = vmatpush1.bf16.msra.mxu0 %v252
    %385 = vmatprep.subr.bf16.mxu0 0
    %386 = vmatpush1.bf16.msra.mxu0 %v251
    %387 = vmatprep.subr.bf16.mxu0 0
    %388 = vmatpush1.bf16.msra.mxu0 %v250
    %389 = vmatprep.subr.bf16.mxu0 0
    %390 = vmatpush1.bf16.msra.mxu0 %v249
    %391 = vmatprep.subr.bf16.mxu0 0
    %392 = vmatpush1.bf16.msra.mxu0 %v248
    %393 = vmatprep.subr.bf16.mxu0 0
    %394 = vmatpush1.bf16.msra.mxu0 %v247
    %395 = vmatprep.subr.bf16.mxu0 0
    %396 = vmatpush2.bf16.msra.mxu0 0
    %397 = vmatprep.subr.bf16.mxu0 0
    %398 = vmatpush2.bf16.msra.mxu0 0
    %399 = vmatprep.subr.bf16.mxu0 0
    %400 = vmatpush2.bf16.msra.mxu0 0
    %401 = vmatprep.subr.bf16.mxu0 0
    %402 = vmatpush2.bf16.msra.mxu0 0
    %403 = vmatprep.subr.bf16.mxu0 0
    %404 = vmatpush2.bf16.msra.mxu0 0
    %405 = vmatprep.subr.bf16.mxu0 0
    %406 = vmatpush2.bf16.msra.mxu0 0
    %407 = vmatprep.subr.bf16.mxu0 0
    %408 = vmatpush2.bf16.msra.mxu0 0
    %409 = vmatprep.subr.bf16.mxu0 0
    %410 = vmatpush2.bf16.msra.mxu0 0
    %411 = vmatprep.mubr.bf16.mxu0 0
    %412 = vmatmul.mubr.bf16.gmra.mxu0 %v86
    %v413 = vpop.f32.mrf.mxu0
    %v414 = vadd.f32 %v374, %v413
    %v415 = vpop.f32.mrf.mxu0
    %v416 = vpop.f32.mrf.mxu0
    %v417 = vpop.f32.mrf.mxu0
    %418 = vdwg.mxu0
    %v419 = vmax.f32 %v414, 0.0
    %s420 = sld [smem:[#allocation3]]
    %v421 = vlaneseq
    %v422 = vshrl.u32 %v421, 7
    %v423 = vlaneseq
    %v424 = vand.u32 %v423, 127
    %v425 = vmul.u32 %v422, 2654435761
    %v426 = vmul.u32 %v424, 2246822519
    %v427 = vadd.s32 %v425, %v426
    %s428 = smul.u32 %s420, 3266489917
    %v429 = vstv %s428
    %v430 = vadd.s32 %v427, %v429
    %v431 = vshrl.u32 %v430, 16
    %v432 = vxor.u32 %v430, %v431
    %v433 = vmul.u32 %v432, 2146121005
    %v434 = vshrl.u32 %v433, 15
    %v435 = vxor.u32 %v433, %v434
    %v436 = vmul.u32 %v435, 2221713035
    %v437 = vshrl.u32 %v436, 16
    %v438 = vxor.u32 %v436, %v437
    %v439 = vand.u32 %v438, 2147483648
    %vm440 = vcmp.eq.s32.totalorder %v439, 0
    %v441 = vand.u32 %v438, 1073741824
    %vm442 = vcmp.eq.s32.totalorder %v441, 0
    %v443 = vmul.f32 %v419, 2.0
    %v444 = vsel %vm440, %v443, 0.0
    %v445 = vrot.slane %v444, 4
    %v446 = vadd.f32 %v444, %v445
    %v447 = vrot.slane %v446, 2
    %v448 = vadd.f32 %v446, %v447
    %v449 = vrot.slane %v448, 1
    %v450 = vadd.f32 %v448, %v449
    %v451 = vmul.f32 %v450, 0.125
    %v452 = vmul.f32 %v444, %v444
    %v453 = vrot.slane %v452, 4
    %v454 = vadd.f32 %v452, %v453
    %v455 = vrot.slane %v454, 2
    %v456 = vadd.f32 %v454, %v455
    %v457 = vrot.slane %v456, 1
    %v458 = vadd.f32 %v456, %v457
    %v459 = vmul.f32 %v458, 0.125
    %v460 = vmul.f32 %v451, %v451
    %v461 = vsub.f32 %v459, %v460
    %v462 = vmax.f32 %v461, 0.0
    %v463 = vsub.f32 %v444, %v451
    %v464 = vadd.f32 %v462, 1e-05
    %v465 = vrsqrt.pop %v464
    %v466 = vmul.f32 %v463, %v465
    %v467 = vlaneseq
    %v468 = vshrl.u32 %v467, 7
    %v469 = vsub.s32 1, %v468
    %v470 = vrot.slane %v79, %v469
    %v471 = vmul.f32 %v466, %v470
    %v472 = vlaneseq
    %v473 = vshrl.u32 %v472, 7
    %v474 = vsub.s32 2, %v473
    %v475 = vrot.slane %v79, %v474
    %v476 = vadd.f32 %v471, %v475
    %v477 = vmax.f32 %v476, 0.0
    %v478 = vpack.c.bf16 %v477, %v477
    %v479 = vld [vmem:[#allocation9] sm:$0xff]
    %v480 = vld [vmem:[#allocation9 + $0x8] sm:$0xff]
    %v481 = vld [vmem:[#allocation9 + $0x10] sm:$0xff]
    %v482 = vld [vmem:[#allocation9 + $0x18] sm:$0xff]
    %v483 = vld [vmem:[#allocation9 + $0x20] sm:$0xff]
    %v484 = vld [vmem:[#allocation9 + $0x28] sm:$0xff]
    %v485 = vld [vmem:[#allocation9 + $0x30] sm:$0xff]
    %v486 = vld [vmem:[#allocation9 + $0x38] sm:$0xff]
    %v487 = vld [vmem:[#allocation9 + $0x40] sm:$0xff]
    %v488 = vld [vmem:[#allocation9 + $0x48] sm:$0xff]
    %v489 = vld [vmem:[#allocation9 + $0x50] sm:$0xff]
    %v490 = vld [vmem:[#allocation9 + $0x58] sm:$0xff]
    %v491 = vld [vmem:[#allocation9 + $0x60] sm:$0xff]
    %v492 = vld [vmem:[#allocation9 + $0x68] sm:$0xff]
    %v493 = vld [vmem:[#allocation9 + $0x70] sm:$0xff]
    %v494 = vld [vmem:[#allocation9 + $0x78] sm:$0xff]
    %v495 = vpack.c.bf16 %v480, %v479
    %v496 = vpack.c.bf16 %v482, %v481
    %v497 = vpack.c.bf16 %v484, %v483
    %v498 = vpack.c.bf16 %v486, %v485
    %v499 = vpack.c.bf16 %v488, %v487
    %v500 = vpack.c.bf16 %v490, %v489
    %v501 = vpack.c.bf16 %v492, %v491
    %v502 = vpack.c.bf16 %v494, %v493
    %v503 = vlaneseq
    %v504 = vshrl.u32 %v503, 7
    %v505 = vsub.s32 3, %v504
    %v506 = vrot.slane %v79, %v505
    %507 = vmatprep.subr.bf16.mxu0 0
    %508 = vmatpush1.bf16.msra.mxu0 %v502
    %509 = vmatprep.subr.bf16.mxu0 0
    %510 = vmatpush1.bf16.msra.mxu0 %v501
    %511 = vmatprep.subr.bf16.mxu0 0
    %512 = vmatpush1.bf16.msra.mxu0 %v500
    %513 = vmatprep.subr.bf16.mxu0 0
    %514 = vmatpush1.bf16.msra.mxu0 %v499
    %515 = vmatprep.subr.bf16.mxu0 0
    %516 = vmatpush1.bf16.msra.mxu0 %v498
    %517 = vmatprep.subr.bf16.mxu0 0
    %518 = vmatpush1.bf16.msra.mxu0 %v497
    %519 = vmatprep.subr.bf16.mxu0 0
    %520 = vmatpush1.bf16.msra.mxu0 %v496
    %521 = vmatprep.subr.bf16.mxu0 0
    %522 = vmatpush1.bf16.msra.mxu0 %v495
    %523 = vmatprep.subr.bf16.mxu0 0
    %524 = vmatpush2.bf16.msra.mxu0 0
    %525 = vmatprep.subr.bf16.mxu0 0
    %526 = vmatpush2.bf16.msra.mxu0 0
    %527 = vmatprep.subr.bf16.mxu0 0
    %528 = vmatpush2.bf16.msra.mxu0 0
    %529 = vmatprep.subr.bf16.mxu0 0
    %530 = vmatpush2.bf16.msra.mxu0 0
    %531 = vmatprep.subr.bf16.mxu0 0
    %532 = vmatpush2.bf16.msra.mxu0 0
    %533 = vmatprep.subr.bf16.mxu0 0
    %534 = vmatpush2.bf16.msra.mxu0 0
    %535 = vmatprep.subr.bf16.mxu0 0
    %536 = vmatpush2.bf16.msra.mxu0 0
    %537 = vmatprep.subr.bf16.mxu0 0
    %538 = vmatpush2.bf16.msra.mxu0 0
    %539 = vmatprep.mubr.bf16.mxu0 0
    %540 = vmatmul.mubr.bf16.gmra.mxu0 %v478
    %v541 = vpop.f32.mrf.mxu0
    %v542 = vadd.f32 %v506, %v541
    %v543 = vpop.f32.mrf.mxu0
    %v544 = vpop.f32.mrf.mxu0
    %v545 = vpop.f32.mrf.mxu0
    %546 = vdwg.mxu0
    %v547 = vmax.f32 %v542, 0.0
    %v548 = vmul.f32 %v547, 2.0
    %v549 = vsel %vm442, %v548, 0.0
    %v550 = vrot.slane %v549, 4
    %v551 = vadd.f32 %v549, %v550
    %v552 = vrot.slane %v551, 2
    %v553 = vadd.f32 %v551, %v552
    %v554 = vrot.slane %v553, 1
    %v555 = vadd.f32 %v553, %v554
    %v556 = vmul.f32 %v555, 0.125
    %v557 = vmul.f32 %v549, %v549
    %v558 = vrot.slane %v557, 4
    %v559 = vadd.f32 %v557, %v558
    %v560 = vrot.slane %v559, 2
    %v561 = vadd.f32 %v559, %v560
    %v562 = vrot.slane %v561, 1
    %v563 = vadd.f32 %v561, %v562
    %v564 = vmul.f32 %v563, 0.125
    %v565 = vmul.f32 %v556, %v556
    %v566 = vsub.f32 %v564, %v565
    %v567 = vmax.f32 %v566, 0.0
    %v568 = vsub.f32 %v549, %v556
    %v569 = vadd.f32 %v567, 1e-05
    %v570 = vrsqrt.pop %v569
    %v571 = vmul.f32 %v568, %v570
    %v572 = vlaneseq
    %v573 = vshrl.u32 %v572, 7
    %v574 = vsub.s32 4, %v573
    %v575 = vrot.slane %v79, %v574
    %v576 = vmul.f32 %v571, %v575
    %v577 = vlaneseq
    %v578 = vshrl.u32 %v577, 7
    %v579 = vsub.s32 5, %v578
    %v580 = vrot.slane %v79, %v579
    %v581 = vadd.f32 %v576, %v580
    %582 = vst [vmem:[#allocation12] sm:$0xff] %v581
    // Predicated region
    $region34: #{tpu_custom_call.1} parent=1 // pred_check
      _
    $region35: #{tpu_custom_call.1} parent=1 // pred_check_branch
      %584 = sbr.rel (0) target = $region37
    $region36: #{tpu_custom_call.1} parent=1 // pred_region
      %s586 = ssub.s32 128, 128
      %587 = vsyncadd [#allocation6], %s586
      %s589 = sshll.u32 [#allocation12], 4
      %s590 = int_to_ptr.vmem [resolvable:$true] %s589
      %592 = dma.vmem_to_hbm [thread:$0]  %s590, 128, %s5, [#allocation6]
    $region37: #{tpu_custom_call.1} parent=1 // pred_fallthru
      _
    // Predicated region
    $region38: #{tpu_custom_call.1} parent=1 // pred_check
      _
    $region39: #{tpu_custom_call.1} parent=1 // pred_check_branch
      %594 = sbr.rel (0) target = $region41
    $region40: #{tpu_custom_call.1} parent=1 // pred_region
      %595 = dma.done [#allocation6], 128
    $region41: #{tpu_custom_call.1} parent=1 // pred_fallthru
      _
    %596 = vsyncpa [#allocation5], 1
    %597 = vsyncpa [#allocation8], 1
    %598 = vsyncpa [#allocation11], 1
    %599 = vsyncpa [#allocation6], 1

</llo_original>
